<compile_context>
chip_gen: v6e
topology: v6e:2x2x1
jax: 0.10.0
libtpu: 0.0.40
codegen_flags: <defaults>
</compile_context>

<pallas_src>
import functools

import jax
import jax.numpy as jnp
import numpy as np
from jax.experimental import pallas as pl
from jax.experimental.pallas import tpu as pltpu


# ----------------------------- Pallas kernel --------------------------------

def mha_kernel(x_ref, wqkv_ref, wo_ref, bo_ref, out_ref, *, n_heads):
    x = x_ref[0]                    # (T, d_in)       bf16 (cast once in wrapper)
    wqkv = wqkv_ref[...]            # (d_in, 3*d_out) bf16, scale folded into Q
    wo = wo_ref[...]                # (d_out, d_out)  bf16
    bo = bo_ref[...]                # (1, d_out)      f32

    T = x.shape[0]
    d_out = wo.shape[0]
    hd = d_out // n_heads

    # Fused Q/K/V projection for all heads at once: one full-width MXU pass.
    qkv = jnp.dot(x, wqkv, preferred_element_type=jnp.float32)   # (T, 3*d_out) f32
    q = qkv[:, 0 * d_out:1 * d_out].astype(jnp.bfloat16)   # 1/sqrt(hd) pre-folded
    k = qkv[:, 1 * d_out:2 * d_out].astype(jnp.bfloat16)
    v = qkv[:, 2 * d_out:3 * d_out].astype(jnp.bfloat16)

    # Causal mask (triu(diagonal=1) blocked); built once, shared by all heads.
    row = jax.lax.broadcasted_iota(jnp.int32, (T, T), 0)
    col = jax.lax.broadcasted_iota(jnp.int32, (T, T), 1)
    causal = col <= row

    # Per-head attention; n_heads is a static Python int so this loop unrolls.
    # Per-head out-projection partial sums accumulate into an f32 value (no
    # out_ref read-modify-write); output is stored exactly once below.
    acc = jnp.zeros((T, d_out), jnp.float32)
    for h in range(n_heads):
        lo, hi = h * hd, (h + 1) * hd
        q_h = q[:, lo:hi]                                         # (T, hd)
        k_h = k[:, lo:hi]
        v_h = v[:, lo:hi]

        # scores = q_h @ k_h^T without materializing the transpose.
        s = jax.lax.dot_general(q_h, k_h, (((1,), (1,)), ((), ())),
                                preferred_element_type=jnp.float32)   # (T, T) f32
        s = jnp.where(causal, s, -jnp.inf)

        # Softmax in f32; divide goes to the EUP via approximate reciprocal.
        s = s - jnp.max(s, axis=-1, keepdims=True)
        p = jnp.exp(s)
        p = p * pl.reciprocal(jnp.sum(p, axis=-1, keepdims=True), approx=True)
        # dropout(attn_weights): identity (inference / drop_rate = 0)

        ctx = jnp.dot(p.astype(jnp.bfloat16), v_h,
                      preferred_element_type=jnp.float32)             # (T, hd) f32
        acc = acc + jnp.dot(ctx.astype(jnp.bfloat16), wo[lo:hi, :],
                            preferred_element_type=jnp.float32)       # (T, d_out)

    out_ref[0] = acc + bo


# ------------------------------- wrapper -------------------------------------

def multi_head_attention(x, wq, wk, wv, wo, bo, n_heads):
    """Causal multi-head attention, same math as the PyTorch module.

    Weights are given in (in_features, out_features) layout (i.e. y = x @ W + b,
    equivalent to PyTorch's x @ W.T + b with W stored transposed).
    """
    B, T, d_in = x.shape
    d_out = wq.shape[1]
    assert d_out % n_heads == 0
    hd = d_out // n_heads

    # Host-side prep (runs once):
    #  * fold 1/sqrt(hd) into the query-projection columns,
    #  * fuse Wq|Wk|Wv into one slab,
    #  * cast everything the MXU touches to bf16 (halves weight/x HBM traffic;
    #    accumulation stays f32 in-kernel).
    scale = 1.0 / (float(hd) ** 0.5)
    wqkv = jnp.concatenate([wq * scale, wk, wv], axis=1).astype(jnp.bfloat16)
    wo_bf16 = wo.astype(jnp.bfloat16)
    bo_f32 = bo.astype(jnp.float32).reshape(1, d_out)
    x_bf16 = x.astype(jnp.bfloat16)

    kernel = functools.partial(mha_kernel, n_heads=n_heads)

    in_specs = [
        pl.BlockSpec((1, T, d_in), lambda b: (b, 0, 0)),       # x (per batch)
        pl.BlockSpec((d_in, 3 * d_out), lambda b: (0, 0)),     # Wqkv (resident)
        pl.BlockSpec((d_out, d_out), lambda b: (0, 0)),        # Wo   (resident)
        pl.BlockSpec((1, d_out), lambda b: (0, 0)),            # bo   (resident)
    ]
    out_spec = pl.BlockSpec((1, T, d_out), lambda b: (b, 0, 0))

    flops = 2 * B * T * d_out * (3 * d_in + 2 * T + d_out)
    transcendentals = B * n_heads * T * T
    bytes_accessed = (2 * B * T * d_in            # x (bf16)
                      + 4 * B * T * d_out         # out (f32)
                      + 2 * d_in * 3 * d_out      # Wqkv (bf16, fetched once)
                      + 2 * d_out * d_out         # Wo   (bf16, fetched once)
                      + 4 * d_out)                # bias

    return pl.pallas_call(
        kernel,
        out_shape=jax.ShapeDtypeStruct((B, T, d_out), jnp.float32),
        grid=(B,),
        in_specs=in_specs,
        out_specs=out_spec,
        compiler_params=pltpu.CompilerParams(
            dimension_semantics=("parallel",),
            # Explicit budget (well under v7x's 64 MiB physical VMEM); this
            # kernel's resident weights + blocks are < 1 MiB at the test shape.
            vmem_limit_bytes=32 * 1024 * 1024),
        cost_estimate=pl.CostEstimate(flops=flops,
                                      transcendentals=transcendentals,
                                      bytes_accessed=bytes_accessed),
    )(x_bf16, wqkv, wo_bf16, bo_f32)


# ----------------------- pure-JAX reference (checking) -----------------------

def reference_forward(x, wq, wk, wv, wo, bo, n_heads):
    B, T, d_in = x.shape
    d_out = wq.shape[1]
    hd = d_out // n_heads

    q = jnp.einsum("bti,io->bto", x, wq)
    k = jnp.einsum("bti,io->bto", x, wk)
    v = jnp.einsum("bti,io->bto", x, wv)
    q = q.reshape(B, T, n_heads, hd).transpose(0, 2, 1, 3)
    k = k.reshape(B, T, n_heads, hd).transpose(0, 2, 1, 3)
    v = v.reshape(B, T, n_heads, hd).transpose(0, 2, 1, 3)

    s = jnp.einsum("bhqd,bhkd->bhqk", q, k)
    mask = jnp.triu(jnp.ones((T, T), dtype=bool), k=1)
    s = jnp.where(mask, -jnp.inf, s)
    p = jax.nn.softmax(s / jnp.sqrt(jnp.float32(hd)), axis=-1)
    ctx = jnp.einsum("bhqk,bhkd->bhqd", p, v)
    ctx = ctx.transpose(0, 2, 1, 3).reshape(B, T, d_out)
    return jnp.einsum("bto,oe->bte", ctx, wo) + bo


# --------------------------------- main ---------------------------------------

if __name__ == "__main__":
    B, T, H = 2, 8, 4                 # batch, seq (= context_length), heads
    D_IN = D_OUT = 128                # lane-dense feature dim (multiple of 128)

    key = jax.random.PRNGKey(0)
    keys = jax.random.split(key, 6)

    x = jax.random.normal(keys[0], (B, T, D_IN), dtype=jnp.float32)

    # Linear weights stored as (in_features, out_features); qkv_bias=False.
    wq = 0.02 * jax.random.normal(keys[1], (D_IN, D_OUT), dtype=jnp.float32)
    wk = 0.02 * jax.random.normal(keys[2], (D_IN, D_OUT), dtype=jnp.float32)
    wv = 0.02 * jax.random.normal(keys[3], (D_IN, D_OUT), dtype=jnp.float32)
    wo = 0.02 * jax.random.normal(keys[4], (D_OUT, D_OUT), dtype=jnp.float32)
    bo = 0.01 * jax.random.normal(keys[5], (D_OUT,), dtype=jnp.float32)

    out = multi_head_attention(x, wq, wk, wv, wo, bo, n_heads=H)
    out = jax.block_until_ready(out)

    ref = jax.block_until_ready(
        reference_forward(x, wq, wk, wv, wo, bo, n_heads=H))

    # bf16 MXU operands + approximate reciprocal -> ~1e-3 relative error budget.
    np.testing.assert_allclose(np.asarray(out), np.asarray(ref),
                               rtol=1e-2, atol=1e-2)

    print("KERNEL_OK")
</pallas_src>

<mosaic_0001>
module attributes {stable_mosaic.version = 11 : i64} {
  func.func @mha_kernel(%arg0: i32, %arg1: memref<1x8x128xbf16, #tpu.memory_space<vmem>>, %arg2: memref<128x384xbf16, #tpu.memory_space<vmem>>, %arg3: memref<128x128xbf16, #tpu.memory_space<vmem>>, %arg4: memref<1x128xf32, #tpu.memory_space<vmem>>, %arg5: memref<1x8x128xf32, #tpu.memory_space<vmem>>) attributes {dimension_semantics = [#tpu.dimension_semantics<parallel>], iteration_bounds = array<i64: 2>, scalar_prefetch = 0 : i64, scratch_operands = 0 : i64, tpu.core_type = #tpu.core_type<tc>, window_params = [{transform_indices = @transform_0, window_bounds = array<i64: 1, 8, 128>}, {pipeline_mode = #tpu.pipeline_mode<synchronous>, transform_indices = @transform_1, window_bounds = array<i64: 128, 384>}, {pipeline_mode = #tpu.pipeline_mode<synchronous>, transform_indices = @transform_2, window_bounds = array<i64: 128, 128>}, {pipeline_mode = #tpu.pipeline_mode<synchronous>, transform_indices = @transform_3, window_bounds = array<i64: 1, 128>}, {transform_indices = @transform_4, window_bounds = array<i64: 1, 8, 128>}]} {
    %c0 = arith.constant 0 : index
    %c0_0 = arith.constant 0 : index
    %c0_1 = arith.constant 0 : index
    %0 = vector.load %arg1[%c0, %c0_0, %c0_1] : memref<1x8x128xbf16, #tpu.memory_space<vmem>>, vector<1x8x128xbf16>
    %1 = vector.shape_cast %0 : vector<1x8x128xbf16> to vector<8x128xbf16>
    %c0_2 = arith.constant 0 : index
    %c0_3 = arith.constant 0 : index
    %2 = vector.load %arg2[%c0_2, %c0_3] : memref<128x384xbf16, #tpu.memory_space<vmem>>, vector<128x384xbf16>
    %c0_4 = arith.constant 0 : index
    %c0_5 = arith.constant 0 : index
    %3 = vector.load %arg3[%c0_4, %c0_5] : memref<128x128xbf16, #tpu.memory_space<vmem>>, vector<128x128xbf16>
    %c0_6 = arith.constant 0 : index
    %c0_7 = arith.constant 0 : index
    %4 = vector.load %arg4[%c0_6, %c0_7] : memref<1x128xf32, #tpu.memory_space<vmem>>, vector<1x128xf32>
    %cst = arith.constant dense<0.000000e+00> : vector<8x384xf32>
    %5 = tpu.matmul %1, %2, %cst {dimension_numbers = #tpu.dot_dimension_numbers<[1], [0], [0], [1], [0, 0, 1, 1], [], []>} : vector<8x128xbf16>, vector<128x384xbf16>, vector<8x384xf32> -> vector<8x384xf32>
    %6 = vector.extract_strided_slice %5 {offsets = [0, 0], sizes = [8, 128], strides = [1, 1]} : vector<8x384xf32> to vector<8x128xf32>
    %7 = arith.truncf %6 : vector<8x128xf32> to vector<8x128xbf16>
    %8 = vector.extract_strided_slice %5 {offsets = [0, 128], sizes = [8, 128], strides = [1, 1]} : vector<8x384xf32> to vector<8x128xf32>
    %9 = arith.truncf %8 : vector<8x128xf32> to vector<8x128xbf16>
    %10 = vector.extract_strided_slice %5 {offsets = [0, 256], sizes = [8, 128], strides = [1, 1]} : vector<8x384xf32> to vector<8x128xf32>
    %11 = arith.truncf %10 : vector<8x128xf32> to vector<8x128xbf16>
    %12 = tpu.iota {dimensions = array<i32: 0>} : vector<8x8xi32>
    %13 = tpu.iota {dimensions = array<i32: 1>} : vector<8x8xi32>
    %14 = arith.cmpi sle, %13, %12 : vector<8x8xi32>
    %cst_8 = arith.constant 0.000000e+00 : f32
    %15 = vector.broadcast %cst_8 : f32 to vector<8x128xf32>
    %16 = vector.extract_strided_slice %7 {offsets = [0, 0], sizes = [8, 32], strides = [1, 1]} : vector<8x128xbf16> to vector<8x32xbf16>
    %17 = vector.extract_strided_slice %9 {offsets = [0, 0], sizes = [8, 32], strides = [1, 1]} : vector<8x128xbf16> to vector<8x32xbf16>
    %18 = vector.extract_strided_slice %11 {offsets = [0, 0], sizes = [8, 32], strides = [1, 1]} : vector<8x128xbf16> to vector<8x32xbf16>
    %cst_9 = arith.constant dense<0.000000e+00> : vector<8x8xf32>
    %19 = tpu.matmul %16, %17, %cst_9 {dimension_numbers = #tpu.dot_dimension_numbers<[1], [1], [0], [0], [0, 0, 1, 0], [], []>} : vector<8x32xbf16>, vector<8x32xbf16>, vector<8x8xf32> -> vector<8x8xf32>
    %cst_10 = arith.constant 0xFF800000 : f32
    %20 = vector.broadcast %cst_10 : f32 to vector<8x8xf32>
    %21 = arith.select %14, %19, %20 : vector<8x8xi1>, vector<8x8xf32>
    %cst_11 = arith.constant dense<0xFF800000> : vector<8xf32>
    %22 = vector.multi_reduction <maximumf>, %21, %cst_11 [1] : vector<8x8xf32> to vector<8xf32>
    %23 = vector.shape_cast %22 : vector<8xf32> to vector<8x1xf32>
    %24 = vector.broadcast %23 : vector<8x1xf32> to vector<8x8xf32>
    %25 = arith.subf %21, %24 : vector<8x8xf32>
    %26 = math.exp %25 : vector<8x8xf32>
    %cst_12 = arith.constant dense<0.000000e+00> : vector<8xf32>
    %27 = vector.multi_reduction <add>, %26, %cst_12 [1] : vector<8x8xf32> to vector<8xf32>
    %28 = vector.shape_cast %27 : vector<8xf32> to vector<8x1xf32>
    %29 = tpu.reciprocal %28 {approx = true} : vector<8x1xf32> -> vector<8x1xf32>
    %30 = vector.broadcast %29 : vector<8x1xf32> to vector<8x8xf32>
    %31 = arith.mulf %26, %30 : vector<8x8xf32>
    %32 = arith.truncf %31 : vector<8x8xf32> to vector<8x8xbf16>
    %cst_13 = arith.constant dense<0.000000e+00> : vector<8x32xf32>
    %33 = tpu.matmul %32, %18, %cst_13 {dimension_numbers = #tpu.dot_dimension_numbers<[1], [0], [0], [1], [0, 0, 1, 1], [], []>} : vector<8x8xbf16>, vector<8x32xbf16>, vector<8x32xf32> -> vector<8x32xf32>
    %34 = arith.truncf %33 : vector<8x32xf32> to vector<8x32xbf16>
    %35 = vector.extract_strided_slice %3 {offsets = [0, 0], sizes = [32, 128], strides = [1, 1]} : vector<128x128xbf16> to vector<32x128xbf16>
    %cst_14 = arith.constant dense<0.000000e+00> : vector<8x128xf32>
    %36 = tpu.matmul %34, %35, %cst_14 {dimension_numbers = #tpu.dot_dimension_numbers<[1], [0], [0], [1], [0, 0, 1, 1], [], []>} : vector<8x32xbf16>, vector<32x128xbf16>, vector<8x128xf32> -> vector<8x128xf32>
    %37 = arith.addf %15, %36 : vector<8x128xf32>
    %38 = vector.extract_strided_slice %7 {offsets = [0, 32], sizes = [8, 32], strides = [1, 1]} : vector<8x128xbf16> to vector<8x32xbf16>
    %39 = vector.extract_strided_slice %9 {offsets = [0, 32], sizes = [8, 32], strides = [1, 1]} : vector<8x128xbf16> to vector<8x32xbf16>
    %40 = vector.extract_strided_slice %11 {offsets = [0, 32], sizes = [8, 32], strides = [1, 1]} : vector<8x128xbf16> to vector<8x32xbf16>
    %cst_15 = arith.constant dense<0.000000e+00> : vector<8x8xf32>
    %41 = tpu.matmul %38, %39, %cst_15 {dimension_numbers = #tpu.dot_dimension_numbers<[1], [1], [0], [0], [0, 0, 1, 0], [], []>} : vector<8x32xbf16>, vector<8x32xbf16>, vector<8x8xf32> -> vector<8x8xf32>
    %cst_16 = arith.constant 0xFF800000 : f32
    %42 = vector.broadcast %cst_16 : f32 to vector<8x8xf32>
    %43 = arith.select %14, %41, %42 : vector<8x8xi1>, vector<8x8xf32>
    %cst_17 = arith.constant dense<0xFF800000> : vector<8xf32>
    %44 = vector.multi_reduction <maximumf>, %43, %cst_17 [1] : vector<8x8xf32> to vector<8xf32>
    %45 = vector.shape_cast %44 : vector<8xf32> to vector<8x1xf32>
    %46 = vector.broadcast %45 : vector<8x1xf32> to vector<8x8xf32>
    %47 = arith.subf %43, %46 : vector<8x8xf32>
    %48 = math.exp %47 : vector<8x8xf32>
    %cst_18 = arith.constant dense<0.000000e+00> : vector<8xf32>
    %49 = vector.multi_reduction <add>, %48, %cst_18 [1] : vector<8x8xf32> to vector<8xf32>
    %50 = vector.shape_cast %49 : vector<8xf32> to vector<8x1xf32>
    %51 = tpu.reciprocal %50 {approx = true} : vector<8x1xf32> -> vector<8x1xf32>
    %52 = vector.broadcast %51 : vector<8x1xf32> to vector<8x8xf32>
    %53 = arith.mulf %48, %52 : vector<8x8xf32>
    %54 = arith.truncf %53 : vector<8x8xf32> to vector<8x8xbf16>
    %cst_19 = arith.constant dense<0.000000e+00> : vector<8x32xf32>
    %55 = tpu.matmul %54, %40, %cst_19 {dimension_numbers = #tpu.dot_dimension_numbers<[1], [0], [0], [1], [0, 0, 1, 1], [], []>} : vector<8x8xbf16>, vector<8x32xbf16>, vector<8x32xf32> -> vector<8x32xf32>
    %56 = arith.truncf %55 : vector<8x32xf32> to vector<8x32xbf16>
    %57 = vector.extract_strided_slice %3 {offsets = [32, 0], sizes = [32, 128], strides = [1, 1]} : vector<128x128xbf16> to vector<32x128xbf16>
    %cst_20 = arith.constant dense<0.000000e+00> : vector<8x128xf32>
    %58 = tpu.matmul %56, %57, %cst_20 {dimension_numbers = #tpu.dot_dimension_numbers<[1], [0], [0], [1], [0, 0, 1, 1], [], []>} : vector<8x32xbf16>, vector<32x128xbf16>, vector<8x128xf32> -> vector<8x128xf32>
    %59 = arith.addf %37, %58 : vector<8x128xf32>
    %60 = vector.extract_strided_slice %7 {offsets = [0, 64], sizes = [8, 32], strides = [1, 1]} : vector<8x128xbf16> to vector<8x32xbf16>
    %61 = vector.extract_strided_slice %9 {offsets = [0, 64], sizes = [8, 32], strides = [1, 1]} : vector<8x128xbf16> to vector<8x32xbf16>
    %62 = vector.extract_strided_slice %11 {offsets = [0, 64], sizes = [8, 32], strides = [1, 1]} : vector<8x128xbf16> to vector<8x32xbf16>
    %cst_21 = arith.constant dense<0.000000e+00> : vector<8x8xf32>
    %63 = tpu.matmul %60, %61, %cst_21 {dimension_numbers = #tpu.dot_dimension_numbers<[1], [1], [0], [0], [0, 0, 1, 0], [], []>} : vector<8x32xbf16>, vector<8x32xbf16>, vector<8x8xf32> -> vector<8x8xf32>
    %cst_22 = arith.constant 0xFF800000 : f32
    %64 = vector.broadcast %cst_22 : f32 to vector<8x8xf32>
    %65 = arith.select %14, %63, %64 : vector<8x8xi1>, vector<8x8xf32>
    %cst_23 = arith.constant dense<0xFF800000> : vector<8xf32>
    %66 = vector.multi_reduction <maximumf>, %65, %cst_23 [1] : vector<8x8xf32> to vector<8xf32>
    %67 = vector.shape_cast %66 : vector<8xf32> to vector<8x1xf32>
    %68 = vector.broadcast %67 : vector<8x1xf32> to vector<8x8xf32>
    %69 = arith.subf %65, %68 : vector<8x8xf32>
    %70 = math.exp %69 : vector<8x8xf32>
    %cst_24 = arith.constant dense<0.000000e+00> : vector<8xf32>
    %71 = vector.multi_reduction <add>, %70, %cst_24 [1] : vector<8x8xf32> to vector<8xf32>
    %72 = vector.shape_cast %71 : vector<8xf32> to vector<8x1xf32>
    %73 = tpu.reciprocal %72 {approx = true} : vector<8x1xf32> -> vector<8x1xf32>
    %74 = vector.broadcast %73 : vector<8x1xf32> to vector<8x8xf32>
    %75 = arith.mulf %70, %74 : vector<8x8xf32>
    %76 = arith.truncf %75 : vector<8x8xf32> to vector<8x8xbf16>
    %cst_25 = arith.constant dense<0.000000e+00> : vector<8x32xf32>
    %77 = tpu.matmul %76, %62, %cst_25 {dimension_numbers = #tpu.dot_dimension_numbers<[1], [0], [0], [1], [0, 0, 1, 1], [], []>} : vector<8x8xbf16>, vector<8x32xbf16>, vector<8x32xf32> -> vector<8x32xf32>
    %78 = arith.truncf %77 : vector<8x32xf32> to vector<8x32xbf16>
    %79 = vector.extract_strided_slice %3 {offsets = [64, 0], sizes = [32, 128], strides = [1, 1]} : vector<128x128xbf16> to vector<32x128xbf16>
    %cst_26 = arith.constant dense<0.000000e+00> : vector<8x128xf32>
    %80 = tpu.matmul %78, %79, %cst_26 {dimension_numbers = #tpu.dot_dimension_numbers<[1], [0], [0], [1], [0, 0, 1, 1], [], []>} : vector<8x32xbf16>, vector<32x128xbf16>, vector<8x128xf32> -> vector<8x128xf32>
    %81 = arith.addf %59, %80 : vector<8x128xf32>
    %82 = vector.extract_strided_slice %7 {offsets = [0, 96], sizes = [8, 32], strides = [1, 1]} : vector<8x128xbf16> to vector<8x32xbf16>
    %83 = vector.extract_strided_slice %9 {offsets = [0, 96], sizes = [8, 32], strides = [1, 1]} : vector<8x128xbf16> to vector<8x32xbf16>
    %84 = vector.extract_strided_slice %11 {offsets = [0, 96], sizes = [8, 32], strides = [1, 1]} : vector<8x128xbf16> to vector<8x32xbf16>
    %cst_27 = arith.constant dense<0.000000e+00> : vector<8x8xf32>
    %85 = tpu.matmul %82, %83, %cst_27 {dimension_numbers = #tpu.dot_dimension_numbers<[1], [1], [0], [0], [0, 0, 1, 0], [], []>} : vector<8x32xbf16>, vector<8x32xbf16>, vector<8x8xf32> -> vector<8x8xf32>
    %cst_28 = arith.constant 0xFF800000 : f32
    %86 = vector.broadcast %cst_28 : f32 to vector<8x8xf32>
    %87 = arith.select %14, %85, %86 : vector<8x8xi1>, vector<8x8xf32>
    %cst_29 = arith.constant dense<0xFF800000> : vector<8xf32>
    %88 = vector.multi_reduction <maximumf>, %87, %cst_29 [1] : vector<8x8xf32> to vector<8xf32>
    %89 = vector.shape_cast %88 : vector<8xf32> to vector<8x1xf32>
    %90 = vector.broadcast %89 : vector<8x1xf32> to vector<8x8xf32>
    %91 = arith.subf %87, %90 : vector<8x8xf32>
    %92 = math.exp %91 : vector<8x8xf32>
    %cst_30 = arith.constant dense<0.000000e+00> : vector<8xf32>
    %93 = vector.multi_reduction <add>, %92, %cst_30 [1] : vector<8x8xf32> to vector<8xf32>
    %94 = vector.shape_cast %93 : vector<8xf32> to vector<8x1xf32>
    %95 = tpu.reciprocal %94 {approx = true} : vector<8x1xf32> -> vector<8x1xf32>
    %96 = vector.broadcast %95 : vector<8x1xf32> to vector<8x8xf32>
    %97 = arith.mulf %92, %96 : vector<8x8xf32>
    %98 = arith.truncf %97 : vector<8x8xf32> to vector<8x8xbf16>
    %cst_31 = arith.constant dense<0.000000e+00> : vector<8x32xf32>
    %99 = tpu.matmul %98, %84, %cst_31 {dimension_numbers = #tpu.dot_dimension_numbers<[1], [0], [0], [1], [0, 0, 1, 1], [], []>} : vector<8x8xbf16>, vector<8x32xbf16>, vector<8x32xf32> -> vector<8x32xf32>
    %100 = arith.truncf %99 : vector<8x32xf32> to vector<8x32xbf16>
    %101 = vector.extract_strided_slice %3 {offsets = [96, 0], sizes = [32, 128], strides = [1, 1]} : vector<128x128xbf16> to vector<32x128xbf16>
    %cst_32 = arith.constant dense<0.000000e+00> : vector<8x128xf32>
    %102 = tpu.matmul %100, %101, %cst_32 {dimension_numbers = #tpu.dot_dimension_numbers<[1], [0], [0], [1], [0, 0, 1, 1], [], []>} : vector<8x32xbf16>, vector<32x128xbf16>, vector<8x128xf32> -> vector<8x128xf32>
    %103 = arith.addf %81, %102 : vector<8x128xf32>
    %104 = vector.broadcast %4 : vector<1x128xf32> to vector<8x128xf32>
    %105 = arith.addf %103, %104 : vector<8x128xf32>
    %c0_33 = arith.constant 0 : index
    %c0_34 = arith.constant 0 : index
    %c0_35 = arith.constant 0 : index
    %106 = vector.load %arg5[%c0_33, %c0_34, %c0_35] : memref<1x8x128xf32, #tpu.memory_space<vmem>>, vector<1x8x128xf32>
    %107 = vector.shape_cast %106 : vector<1x8x128xf32> to vector<8x128xf32>
    %108 = vector.shape_cast %105 : vector<8x128xf32> to vector<1x8x128xf32>
    tpu.vector_store %arg5[%c0_33, %c0_34, %c0_35], %108 {strides = array<i32>} : memref<1x8x128xf32, #tpu.memory_space<vmem>>, vector<1x8x128xf32>,
    return
  }
  func.func @transform_0(%arg0: i32) -> (i32, i32, i32) {
    %c0_i32 = arith.constant 0 : i32
    %c0_i32_0 = arith.constant 0 : i32
    %c0_i32_1 = arith.constant 0 : i32
    return %arg0, %c0_i32, %c0_i32_0 : i32, i32, i32
  }
  func.func @transform_1(%arg0: i32) -> (i32, i32) {
    %c0_i32 = arith.constant 0 : i32
    %c0_i32_0 = arith.constant 0 : i32
    %c0_i32_1 = arith.constant 0 : i32
    return %c0_i32, %c0_i32_0 : i32, i32
  }
  func.func @transform_2(%arg0: i32) -> (i32, i32) {
    %c0_i32 = arith.constant 0 : i32
    %c0_i32_0 = arith.constant 0 : i32
    %c0_i32_1 = arith.constant 0 : i32
    return %c0_i32, %c0_i32_0 : i32, i32
  }
  func.func @transform_3(%arg0: i32) -> (i32, i32) {
    %c0_i32 = arith.constant 0 : i32
    %c0_i32_0 = arith.constant 0 : i32
    %c0_i32_1 = arith.constant 0 : i32
    return %c0_i32, %c0_i32_0 : i32, i32
  }
  func.func @transform_4(%arg0: i32) -> (i32, i32, i32) {
    %c0_i32 = arith.constant 0 : i32
    %c0_i32_0 = arith.constant 0 : i32
    %c0_i32_1 = arith.constant 0 : i32
    return %arg0, %c0_i32, %c0_i32_0 : i32, i32, i32
  }
}

</mosaic_0001>

<llo_original>
// kernel: tpu_custom_call.1
$region0: #{tpu_custom_call.1}
  #allocation0 [shape = 'u32[]', space=smem, size = 0x4, offset = 0x4, fixed_abs, tag = 'smem constant byte address 0x4 - core index']
  #allocation1 [shape = 'u32[144,128]{1,0:T(1,128)}', space=vmem, size = 0x12000, scoped, tag = 'internal scratch']
  %s0 = inlined_call_operand.hbm [shape: bf16[2,8,128], index: 0, kind: input, shape index: {}]
  %s1 = inlined_call_operand.hbm [shape: bf16[128,384], index: 1, kind: input, shape index: {}]
  %s2 = inlined_call_operand.hbm [shape: bf16[128,128], index: 2, kind: input, shape index: {}]
  %s3 = inlined_call_operand.vmem [shape: f32[1,128], index: 3, kind: input, shape index: {}]
  %s4 = inlined_call_operand.hbm [shape: f32[2,8,128], index: 4, kind: output, shape index: {}]
  %s5 = sld [smem:[#allocation0]]
  $region61: #{tpu_custom_call.1} parent=0
    _
  %s7 = ssub.s32 1, %s5
  %s8 = scalar_select 0, %s7, %s5
  $region1: #{tpu_custom_call.1} parent=0
    #allocation2 [shape = 'u8[4096]{0}', space=vmem, size = 0x1000, scoped, tag = 'input window, operand 0']
    #allocation3 [shape = 's32[2]{0}', space=sflag, size = 0x8, scoped, tag = 'scoped memory for tpu_custom_call.1']
    #allocation4 [shape = 's32[2]{0}', space=sflag, size = 0x8, scoped, tag = 'scoped memory for tpu_custom_call.1']
    #allocation5 [shape = 'u8[98304]{0}', space=vmem, size = 0x18000, scoped, tag = 'input window, operand 1, single buffered']
    #allocation6 [shape = 's32[1]{0}', space=sflag, size = 0x4, scoped, tag = 'scoped memory for tpu_custom_call.1']
    #allocation7 [shape = 'u8[32768]{0}', space=vmem, size = 0x8000, scoped, tag = 'input window, operand 2, single buffered']
    #allocation8 [shape = 'u8[8192]{0}', space=vmem, size = 0x2000, scoped, tag = 'output window, operand 0']
    %9 = vsyncpa [#allocation3], 0
    %s10 = scalar_lea.sflag [#allocation3], 1
    %11 = vsyncpa %s10, 0
    %12 = vsyncpa [#allocation6], 0
    %13 = vsyncpa [#allocation4], 0
    %s14 = scalar_lea.sflag [#allocation4], 1
    %15 = vsyncpa %s14, 0
    loop: start=0, step=1, limit=4
    $region2: #{tpu_custom_call.1} parent=1 // loop_pre_header
      _
    $region3: #{tpu_custom_call.1} parent=1 // loop_header
      %s17 = sphi 0, %s21
      %p18 = scmp.ge.s32.totalorder %s17, 4
      %s27 = sphi 0, %s29
      %s30 = sphi 0, %s27
      %s31 = sphi 0, %s30
      %s47 = sphi 0, %s31
      %s51 = sphi 0, %s51
      %s53 = sphi 0, %s51
      %s54 = sphi 0, %s53
      %s68 = sphi 0, %s54
      %s72 = sphi 0, %s72
      %s74 = sphi 0, %s72
      %s75 = sphi 0, %s74
      %s89 = sphi 0, %s75
      %s93 = sphi 0, %s93
      %s95 = sphi 0, %s93
      %s96 = sphi 0, %s95
      %s110 = sphi 0, %s96
      %s116 = sphi 0, %s118
      %s119 = sphi 0, %s116
      %s120 = sphi 0, %s119
      %s136 = sphi 0, %s120
    $region4: #{tpu_custom_call.1} parent=1 // loop_header_branch
      %20 = sbr.rel (%p18) target = $region8
    $region5: #{tpu_custom_call.1} parent=1 // loop_body
      %s22 = ssub.s32 %s17, 1
      %s23 = ssub.s32 %s17, 2
      %s24 = sadd.s32 %s17, 1
      %s25 = ssub.s32 %s17, %s24
      %p26 = scmp.eq.s32.totalorder %s25, 0
      %s28 = sadd.s32 %s27, 1
      %s29 = scalar_select %p26, %s27, %s28
      %p32 = pneg %p26
      %p33 = scmp.eq.s32.totalorder %s17, 1
      %p34 = por %p32, %p33
      %p35 = scmp.ne.s32.totalorder %s27, %s30
      %p36 = scmp.eq.s32.totalorder %s17, 0
      %p37 = por %p35, %p36
      %p38 = scmp.ne.s32.totalorder %s27, %s30
      %p39 = scmp.eq.s32.totalorder %s22, 1
      %p40 = por %p38, %p39
      %p41 = scmp.ne.s32.totalorder %s30, %s31
      %p42 = scmp.eq.s32.totalorder %s22, 0
      %p43 = por %p41, %p42
      %p44 = scmp.ne.s32.totalorder %s30, %s31
      %p45 = scmp.eq.s32.totalorder %s23, 1
      %p46 = por %p44, %p45
      %p48 = scmp.ne.s32.totalorder %s31, %s47
      %p49 = scmp.eq.s32.totalorder %s23, 0
      %p50 = por %p48, %p49
      %s52 = sadd.s32 %s51, 1
      %p55 = scmp.eq.s32.totalorder %s17, 1
      %p56 = scmp.ne.s32.totalorder %s51, %s53
      %p57 = scmp.eq.s32.totalorder %s17, 0
      %p58 = por %p56, %p57
      %p59 = scmp.ne.s32.totalorder %s51, %s53
      %p60 = scmp.eq.s32.totalorder %s22, 1
      %p61 = por %p59, %p60
      %p62 = scmp.ne.s32.totalorder %s53, %s54
      %p63 = scmp.eq.s32.totalorder %s22, 0
      %p64 = por %p62, %p63
      %p65 = scmp.ne.s32.totalorder %s53, %s54
      %p66 = scmp.eq.s32.totalorder %s23, 1
      %p67 = por %p65, %p66
      %p69 = scmp.ne.s32.totalorder %s54, %s68
      %p70 = scmp.eq.s32.totalorder %s23, 0
      %p71 = por %p69, %p70
      %s73 = sadd.s32 %s72, 1
      %p76 = scmp.eq.s32.totalorder %s17, 1
      %p77 = scmp.ne.s32.totalorder %s72, %s74
      %p78 = scmp.eq.s32.totalorder %s17, 0
      %p79 = por %p77, %p78
      %p80 = scmp.ne.s32.totalorder %s72, %s74
      %p81 = scmp.eq.s32.totalorder %s22, 1
      %p82 = por %p80, %p81
      %p83 = scmp.ne.s32.totalorder %s74, %s75
      %p84 = scmp.eq.s32.totalorder %s22, 0
      %p85 = por %p83, %p84
      %p86 = scmp.ne.s32.totalorder %s74, %s75
      %p87 = scmp.eq.s32.totalorder %s23, 1
      %p88 = por %p86, %p87
      %p90 = scmp.ne.s32.totalorder %s75, %s89
      %p91 = scmp.eq.s32.totalorder %s23, 0
      %p92 = por %p90, %p91
      %s94 = sadd.s32 %s93, 1
      %p97 = scmp.eq.s32.totalorder %s17, 1
      %p98 = scmp.ne.s32.totalorder %s93, %s95
      %p99 = scmp.eq.s32.totalorder %s17, 0
      %p100 = por %p98, %p99
      %p101 = scmp.ne.s32.totalorder %s93, %s95
      %p102 = scmp.eq.s32.totalorder %s22, 1
      %p103 = por %p101, %p102
      %p104 = scmp.ne.s32.totalorder %s95, %s96
      %p105 = scmp.eq.s32.totalorder %s22, 0
      %p106 = por %p104, %p105
      %p107 = scmp.ne.s32.totalorder %s95, %s96
      %p108 = scmp.eq.s32.totalorder %s23, 1
      %p109 = por %p107, %p108
      %p111 = scmp.ne.s32.totalorder %s96, %s110
      %p112 = scmp.eq.s32.totalorder %s23, 0
      %p113 = por %p111, %p112
      %s114 = ssub.s32 %s17, %s24
      %p115 = scmp.eq.s32.totalorder %s114, 0
      %s117 = sadd.s32 %s116, 1
      %s118 = scalar_select %p115, %s116, %s117
      %p121 = pneg %p115
      %p122 = scmp.eq.s32.totalorder %s17, 1
      %p123 = por %p121, %p122
      %p124 = scmp.ne.s32.totalorder %s116, %s119
      %p125 = scmp.eq.s32.totalorder %s17, 0
      %p126 = por %p124, %p125
      %p127 = scmp.ne.s32.totalorder %s116, %s119
      %p128 = scmp.eq.s32.totalorder %s22, 1
      %p129 = por %p127, %p128
      %p130 = scmp.ne.s32.totalorder %s119, %s120
      %p131 = scmp.eq.s32.totalorder %s22, 0
      %p132 = por %p130, %p131
      %p133 = scmp.ne.s32.totalorder %s119, %s120
      %p134 = scmp.eq.s32.totalorder %s23, 1
      %p135 = por %p133, %p134
      %p137 = scmp.ne.s32.totalorder %s120, %s136
      %p138 = scmp.eq.s32.totalorder %s23, 0
      %p139 = por %p137, %p138
      %p140 = scmp.le.s32.totalorder 1, %s17
      %p141 = scmp.lt.s32.totalorder %s17, 3
      %p142 = pnand %p140, %p141
      %p143 = pneg %p142
      // Predicated region
      $region9: #{tpu_custom_call.1} parent=5 // pred_check
        _
      $region10: #{tpu_custom_call.1} parent=5 // pred_check_branch
        %145 = sbr.rel (%p142) target = $region12
      $region11: #{tpu_custom_call.1} parent=5 // pred_region
        %s146 = ssub.s32 %s17, 1
        // Predicated region
        $region13: #{tpu_custom_call.1} parent=11 // pred_check
          %p147 = pneg %p64
        $region14: #{tpu_custom_call.1} parent=11 // pred_check_branch
          %149 = sbr.rel (%p147) target = $region16
        $region15: #{tpu_custom_call.1} parent=11 // pred_region
          %s151 = ssub.s32 3072, 3072
          %152 = vsyncadd [#allocation6], %s151
          %s153 = sshll.u32 [#allocation5], 4
          %s154 = int_to_ptr.vmem [resolvable:$true] %s153
          %159 = dma.hbm_to_vmem [thread:$0]  %s1, 3072, %s154, [#allocation6], 192, 192, 12
        $region16: #{tpu_custom_call.1} parent=11 // pred_fallthru
          _
        // Predicated region
        $region17: #{tpu_custom_call.1} parent=11 // pred_check
          %p160 = pneg %p85
        $region18: #{tpu_custom_call.1} parent=11 // pred_check_branch
          %162 = sbr.rel (%p160) target = $region20
        $region19: #{tpu_custom_call.1} parent=11 // pred_region
          %s164 = ssub.s32 1024, 1024
          %165 = vsyncadd [#allocation6], %s164
          %s166 = sshll.u32 [#allocation7], 4
          %s167 = int_to_ptr.vmem [resolvable:$true] %s166
          %172 = dma.hbm_to_vmem [thread:$0]  %s2, 1024, %s167, [#allocation6], 64, 64, 4
        $region20: #{tpu_custom_call.1} parent=11 // pred_fallthru
          _
        // Predicated region
        $region21: #{tpu_custom_call.1} parent=11 // pred_check
          %p173 = pneg %p106
        $region22: #{tpu_custom_call.1} parent=11 // pred_check_branch
          %175 = sbr.rel (%p173) target = $region24
        $region23: #{tpu_custom_call.1} parent=11 // pred_region
          _
        $region24: #{tpu_custom_call.1} parent=11 // pred_fallthru
          _
      $region12: #{tpu_custom_call.1} parent=5 // pred_fallthru
        _
      %p176 = scmp.lt.s32.totalorder %s17, 2
      // Predicated region
      $region25: #{tpu_custom_call.1} parent=5 // pred_check
        %p177 = pneg %p176
      $region26: #{tpu_custom_call.1} parent=5 // pred_check_branch
        %179 = sbr.rel (%p177) target = $region28
      $region27: #{tpu_custom_call.1} parent=5 // pred_region
        // Predicated region
        $region29: #{tpu_custom_call.1} parent=27 // pred_check
          %p180 = pneg %p37
        $region30: #{tpu_custom_call.1} parent=27 // pred_check_branch
          %182 = sbr.rel (%p180) target = $region32
        $region31: #{tpu_custom_call.1} parent=27 // pred_region
          %s183 = sand.u32 %s27, 1
          %s184 = scalar_lea.sflag [#allocation3], %s183
          %s185 = sand.u32 %s27, 1
          %s186 = smul.addr %s185, 4
          %s187 = scalar_lea.vmem [#allocation2], %s186
          %s189 = ssub.s32 64, 64
          %190 = vsyncadd %s184, %s189
          %s191 = smul.addr %s17, 64
          %s192 = scalar_lea.hbm %s0, %s191
          %s194 = sshll.u32 %s187, 4
          %s195 = int_to_ptr.vmem [resolvable:$true] %s194
          %197 = dma.hbm_to_vmem [thread:$0]  %s192, 64, %s195, %s184
        $region32: #{tpu_custom_call.1} parent=27 // pred_fallthru
          _
      $region28: #{tpu_custom_call.1} parent=5 // pred_fallthru
        _
      %p198 = scmp.le.s32.totalorder 1, %s17
      %p199 = scmp.lt.s32.totalorder %s17, 3
      %p200 = pnand %p198, %p199
      %p201 = pneg %p200
      // Predicated region
      $region33: #{tpu_custom_call.1} parent=5 // pred_check
        _
      $region34: #{tpu_custom_call.1} parent=5 // pred_check_branch
        %203 = sbr.rel (%p200) target = $region36
      $region35: #{tpu_custom_call.1} parent=5 // pred_region
        %s204 = ssub.s32 %s17, 1
        %s205 = sand.u32 %s30, 1
        %s206 = scalar_lea.sflag [#allocation3], %s205
        %s207 = sand.u32 %s30, 1
        %s208 = smul.addr %s207, 4
        %s209 = scalar_lea.vmem [#allocation2], %s208
        // Predicated region
        $region37: #{tpu_custom_call.1} parent=35 // pred_check
          %p210 = pneg %p43
        $region38: #{tpu_custom_call.1} parent=35 // pred_check_branch
          %212 = sbr.rel (%p210) target = $region40
        $region39: #{tpu_custom_call.1} parent=35 // pred_region
          %213 = dma.done %s206, 64
        $region40: #{tpu_custom_call.1} parent=35 // pred_fallthru
          _
        // Predicated region
        $region41: #{tpu_custom_call.1} parent=35 // pred_check
          %p214 = pneg %p64
        $region42: #{tpu_custom_call.1} parent=35 // pred_check_branch
          %216 = sbr.rel (%p214) target = $region44
        $region43: #{tpu_custom_call.1} parent=35 // pred_region
          %217 = dma.done [#allocation6], 3072
        $region44: #{tpu_custom_call.1} parent=35 // pred_fallthru
          _
        // Predicated region
        $region45: #{tpu_custom_call.1} parent=35 // pred_check
          %p218 = pneg %p85
        $region46: #{tpu_custom_call.1} parent=35 // pred_check_branch
          %220 = sbr.rel (%p218) target = $region48
        $region47: #{tpu_custom_call.1} parent=35 // pred_region
          %221 = dma.done [#allocation6], 1024
        $region48: #{tpu_custom_call.1} parent=35 // pred_fallthru
          _
        %s222 = sand.u32 %s30, 1
        %s223 = scalar_lea.sflag [#allocation3], %s222
        %s224 = sand.u32 %s30, 1
        %s225 = smul.addr %s224, 4
        %s226 = scalar_lea.vmem [#allocation2], %s225
        %p227 = pneg %p43
        %p228 = pneg %p40
        %p229 = pneg %p64
        %p230 = pneg %p61
        %p231 = pneg %p85
        %p232 = pneg %p82
        %p233 = pneg %p106
        %p234 = pneg %p103
        %p235 = pneg %p132
        %p236 = pneg %p129
        %s237 = sand.u32 %s119, 1
        %s238 = scalar_lea.sflag [#allocation4], %s237
        %s239 = sand.u32 %s119, 1
        %s240 = smul.addr %s239, 8
        %s241 = scalar_lea.vmem [#allocation8], %s240
        %v243 = vld [vmem:[%s209] sm:$0xf]
        %v244 = vld [vmem:[#allocation5] sm:$0xff]
        %v245 = vld [vmem:[#allocation5 + $0x8] sm:$0xf]
        %v246 = vld [vmem:[#allocation5 + $0xc] sm:$0xff]
        %v247 = vld [vmem:[#allocation5 + $0x14] sm:$0xf]
        %v248 = vld [vmem:[#allocation5 + $0x18] sm:$0xff]
        %v249 = vld [vmem:[#allocation5 + $0x20] sm:$0xf]
        %v250 = vld [vmem:[#allocation5 + $0x24] sm:$0xff]
        %v251 = vld [vmem:[#allocation5 + $0x2c] sm:$0xf]
        %v252 = vld [vmem:[#allocation5 + $0x30] sm:$0xff]
        %v253 = vld [vmem:[#allocation5 + $0x38] sm:$0xf]
        %v254 = vld [vmem:[#allocation5 + $0x3c] sm:$0xff]
        %v255 = vld [vmem:[#allocation5 + $0x44] sm:$0xf]
        %v256 = vld [vmem:[#allocation5 + $0x48] sm:$0xff]
        %v257 = vld [vmem:[#allocation5 + $0x50] sm:$0xf]
        %v258 = vld [vmem:[#allocation5 + $0x54] sm:$0xff]
        %v259 = vld [vmem:[#allocation5 + $0x5c] sm:$0xf]
        %v260 = vld [vmem:[#allocation5 + $0x60] sm:$0xff]
        %v261 = vld [vmem:[#allocation5 + $0x68] sm:$0xf]
        %v262 = vld [vmem:[#allocation5 + $0x6c] sm:$0xff]
        %v263 = vld [vmem:[#allocation5 + $0x74] sm:$0xf]
        %v264 = vld [vmem:[#allocation5 + $0x78] sm:$0xff]
        %v265 = vld [vmem:[#allocation5 + $0x80] sm:$0xf]
        %v266 = vld [vmem:[#allocation5 + $0x84] sm:$0xff]
        %v267 = vld [vmem:[#allocation5 + $0x8c] sm:$0xf]
        %v268 = vld [vmem:[#allocation5 + $0x90] sm:$0xff]
        %v269 = vld [vmem:[#allocation5 + $0x98] sm:$0xf]
        %v270 = vld [vmem:[#allocation5 + $0x9c] sm:$0xff]
        %v271 = vld [vmem:[#allocation5 + $0xa4] sm:$0xf]
        %v272 = vld [vmem:[#allocation5 + $0xa8] sm:$0xff]
        %v273 = vld [vmem:[#allocation5 + $0xb0] sm:$0xf]
        %v274 = vld [vmem:[#allocation5 + $0xb4] sm:$0xff]
        %v275 = vld [vmem:[#allocation5 + $0xbc] sm:$0xf]
        %v276 = vld [vmem:[#allocation7] sm:$0xf]
        %v277 = vld [vmem:[#allocation7 + $0x4] sm:$0xf]
        %v278 = vld [vmem:[#allocation7 + $0x8] sm:$0xf]
        %v279 = vld [vmem:[#allocation7 + $0xc] sm:$0xf]
        %v280 = vld [vmem:[#allocation7 + $0x10] sm:$0xf]
        %v281 = vld [vmem:[#allocation7 + $0x14] sm:$0xf]
        %v282 = vld [vmem:[#allocation7 + $0x18] sm:$0xf]
        %v283 = vld [vmem:[#allocation7 + $0x1c] sm:$0xf]
        %v284 = vld [vmem:[#allocation7 + $0x20] sm:$0xf]
        %v285 = vld [vmem:[#allocation7 + $0x24] sm:$0xf]
        %v286 = vld [vmem:[#allocation7 + $0x28] sm:$0xf]
        %v287 = vld [vmem:[#allocation7 + $0x2c] sm:$0xf]
        %v288 = vld [vmem:[#allocation7 + $0x30] sm:$0xf]
        %v289 = vld [vmem:[#allocation7 + $0x34] sm:$0xf]
        %v290 = vld [vmem:[#allocation7 + $0x38] sm:$0xf]
        %v291 = vld [vmem:[#allocation7 + $0x3c] sm:$0xf]
        %v292 = vld [vmem:[%s3] sm:$0x1]
        %v325 = vunpack.c.l.b16 %v244
        %v326 = vunpack.c.h.b16 %v244
        %v327 = vunpack.c.l.b16 %v245
        %v328 = vunpack.c.l.b16 %v246
        %v329 = vunpack.c.h.b16 %v246
        %v330 = vunpack.c.l.b16 %v247
        %v331 = vunpack.c.l.b16 %v248
        %v332 = vunpack.c.h.b16 %v248
        %v333 = vunpack.c.l.b16 %v249
        %v334 = vunpack.c.l.b16 %v250
        %v335 = vunpack.c.h.b16 %v250
        %v336 = vunpack.c.l.b16 %v251
        %v337 = vunpack.c.l.b16 %v252
        %v338 = vunpack.c.h.b16 %v252
        %v339 = vunpack.c.l.b16 %v253
        %v340 = vunpack.c.l.b16 %v254
        %v341 = vunpack.c.h.b16 %v254
        %v342 = vunpack.c.l.b16 %v255
        %v343 = vunpack.c.l.b16 %v256
        %v344 = vunpack.c.h.b16 %v256
        %v345 = vunpack.c.l.b16 %v257
        %v346 = vunpack.c.l.b16 %v258
        %v347 = vunpack.c.h.b16 %v258
        %v348 = vunpack.c.l.b16 %v259
        %v349 = vunpack.c.l.b16 %v260
        %v350 = vunpack.c.h.b16 %v260
        %v351 = vunpack.c.l.b16 %v261
        %v352 = vunpack.c.l.b16 %v262
        %v353 = vunpack.c.h.b16 %v262
        %v354 = vunpack.c.l.b16 %v263
        %v355 = vunpack.c.l.b16 %v264
        %v356 = vunpack.c.h.b16 %v264
        %v357 = vunpack.c.l.b16 %v265
        %v358 = vunpack.c.l.b16 %v266
        %v359 = vunpack.c.h.b16 %v266
        %v360 = vunpack.c.l.b16 %v267
        %v361 = vunpack.c.l.b16 %v268
        %v362 = vunpack.c.h.b16 %v268
        %v363 = vunpack.c.l.b16 %v269
        %v364 = vunpack.c.l.b16 %v270
        %v365 = vunpack.c.h.b16 %v270
        %v366 = vunpack.c.l.b16 %v271
        %v367 = vunpack.c.l.b16 %v272
        %v368 = vunpack.c.h.b16 %v272
        %v369 = vunpack.c.l.b16 %v273
        %v370 = vunpack.c.l.b16 %v274
        %v371 = vunpack.c.h.b16 %v274
        %v372 = vunpack.c.l.b16 %v275
        %v373 = vpack.c.b16 %v328, %v325
        %v374 = vpack.c.b16 %v329, %v326
        %v375 = vpack.c.b16 %v330, %v327
        %v376 = vpack.c.b16 %v334, %v331
        %v377 = vpack.c.b16 %v335, %v332
        %v378 = vpack.c.b16 %v336, %v333
        %v379 = vpack.c.b16 %v340, %v337
        %v380 = vpack.c.b16 %v341, %v338
        %v381 = vpack.c.b16 %v342, %v339
        %v382 = vpack.c.b16 %v346, %v343
        %v383 = vpack.c.b16 %v347, %v344
        %v384 = vpack.c.b16 %v348, %v345
        %v385 = vpack.c.b16 %v352, %v349
        %v386 = vpack.c.b16 %v353, %v350
        %v387 = vpack.c.b16 %v354, %v351
        %v388 = vpack.c.b16 %v358, %v355
        %v389 = vpack.c.b16 %v359, %v356
        %v390 = vpack.c.b16 %v360, %v357
        %v391 = vpack.c.b16 %v364, %v361
        %v392 = vpack.c.b16 %v365, %v362
        %v393 = vpack.c.b16 %v366, %v363
        %v394 = vpack.c.b16 %v370, %v367
        %v395 = vpack.c.b16 %v371, %v368
        %v396 = vpack.c.b16 %v372, %v369
        %421 = vmatprep.subr.bf16.mxu0 %v395
        %422 = vmatpush1.bf16.msra.mxu0 %v394
        %423 = vmatprep.subr.bf16.mxu0 %v392
        %424 = vmatpush1.bf16.msra.mxu0 %v391
        %425 = vmatprep.subr.bf16.mxu0 %v389
        %426 = vmatpush1.bf16.msra.mxu0 %v388
        %427 = vmatprep.subr.bf16.mxu0 %v386
        %428 = vmatpush1.bf16.msra.mxu0 %v385
        %429 = vmatprep.subr.bf16.mxu0 %v383
        %430 = vmatpush1.bf16.msra.mxu0 %v382
        %431 = vmatprep.subr.bf16.mxu0 %v380
        %432 = vmatpush1.bf16.msra.mxu0 %v379
        %433 = vmatprep.subr.bf16.mxu0 %v377
        %434 = vmatpush1.bf16.msra.mxu0 %v376
        %435 = vmatprep.subr.bf16.mxu0 %v374
        %436 = vmatpush1.bf16.msra.mxu0 %v373
        %437 = vmatprep.subr.bf16.mxu0 0
        %438 = vmatpush2.bf16.msra.mxu0 0
        %439 = vmatprep.subr.bf16.mxu0 0
        %440 = vmatpush2.bf16.msra.mxu0 0
        %441 = vmatprep.subr.bf16.mxu0 0
        %442 = vmatpush2.bf16.msra.mxu0 0
        %443 = vmatprep.subr.bf16.mxu0 0
        %444 = vmatpush2.bf16.msra.mxu0 0
        %445 = vmatprep.subr.bf16.mxu0 0
        %446 = vmatpush2.bf16.msra.mxu0 0
        %447 = vmatprep.subr.bf16.mxu0 0
        %448 = vmatpush2.bf16.msra.mxu0 0
        %449 = vmatprep.subr.bf16.mxu0 0
        %450 = vmatpush2.bf16.msra.mxu0 0
        %451 = vmatprep.subr.bf16.mxu0 0
        %452 = vmatpush2.bf16.msra.mxu0 0
        %453 = vmatprep.mubr.bf16.mxu0 0
        %454 = vmatmul.mubr.bf16.gmra.mxu0 %v243
        %v455 = vpop.f32.mrf.mxu0
        %v456 = vadd.f32 0.0, %v455
        %v457 = vpop.f32.mrf.mxu0
        %v458 = vadd.f32 0.0, %v457
        %v459 = vpop.f32.mrf.mxu0
        %v460 = vpop.f32.mrf.mxu0
        %461 = vdwg.mxu0
        %462 = vmatprep.subr.bf16.mxu0 0
        %463 = vmatpush1.bf16.msra.mxu0 %v396
        %464 = vmatprep.subr.bf16.mxu0 0
        %465 = vmatpush1.bf16.msra.mxu0 %v393
        %466 = vmatprep.subr.bf16.mxu0 0
        %467 = vmatpush1.bf16.msra.mxu0 %v390
        %468 = vmatprep.subr.bf16.mxu0 0
        %469 = vmatpush1.bf16.msra.mxu0 %v387
        %470 = vmatprep.subr.bf16.mxu0 0
        %471 = vmatpush1.bf16.msra.mxu0 %v384
        %472 = vmatprep.subr.bf16.mxu0 0
        %473 = vmatpush1.bf16.msra.mxu0 %v381
        %474 = vmatprep.subr.bf16.mxu0 0
        %475 = vmatpush1.bf16.msra.mxu0 %v378
        %476 = vmatprep.subr.bf16.mxu0 0
        %477 = vmatpush1.bf16.msra.mxu0 %v375
        %478 = vmatprep.subr.bf16.mxu0 0
        %479 = vmatpush2.bf16.msra.mxu0 0
        %480 = vmatprep.subr.bf16.mxu0 0
        %481 = vmatpush2.bf16.msra.mxu0 0
        %482 = vmatprep.subr.bf16.mxu0 0
        %483 = vmatpush2.bf16.msra.mxu0 0
        %484 = vmatprep.subr.bf16.mxu0 0
        %485 = vmatpush2.bf16.msra.mxu0 0
        %486 = vmatprep.subr.bf16.mxu0 0
        %487 = vmatpush2.bf16.msra.mxu0 0
        %488 = vmatprep.subr.bf16.mxu0 0
        %489 = vmatpush2.bf16.msra.mxu0 0
        %490 = vmatprep.subr.bf16.mxu0 0
        %491 = vmatpush2.bf16.msra.mxu0 0
        %492 = vmatprep.subr.bf16.mxu0 0
        %493 = vmatpush2.bf16.msra.mxu0 0
        %494 = vmatprep.mubr.bf16.mxu0 0
        %495 = vmatmul.mubr.bf16.gmra.mxu0 %v243
        %v496 = vpop.f32.mrf.mxu0
        %v497 = vadd.f32 0.0, %v496
        %v498 = vpop.f32.mrf.mxu0
        %v499 = vpop.f32.mrf.mxu0
        %v500 = vpop.f32.mrf.mxu0
        %501 = vdwg.mxu0
        %v502 = vpack.c.bf16 %v456, %v456
        %v503 = vpack.c.bf16 %v458, %v458
        %v504 = vpack.c.bf16 %v497, %v497
        %v505 = vlaneseq
        %v506 = vshrl.u32 %v505, 7
        %v507 = vlaneseq
        %v508 = vand.u32 %v507, 127
        %vm509 = vcmp.le.s32.totalorder %v508, %v506
        %vm510 = vcmask 261120
        %v512 = vsel %vm510, %v502, 0
        %v515 = vsel %vm510, %v503, 0
        %517 = vmatprep.subr.bf16.mxu0 0
        %518 = vmatpush1.bf16.xpose.msra.mxu0 0
        %519 = vmatprep.subr.bf16.mxu0 0
        %520 = vmatpush1.bf16.xpose.msra.mxu0 0
        %521 = vmatprep.subr.bf16.mxu0 0
        %522 = vmatpush1.bf16.xpose.msra.mxu0 0
        %523 = vmatprep.subr.bf16.mxu0 0
        %524 = vmatpush1.bf16.xpose.msra.mxu0 0
        %525 = vmatprep.subr.bf16.mxu0 0
        %526 = vmatpush1.bf16.xpose.msra.mxu0 0
        %527 = vmatprep.subr.bf16.mxu0 0
        %528 = vmatpush1.bf16.xpose.msra.mxu0 0
        %529 = vmatprep.subr.bf16.mxu0 0
        %530 = vmatpush1.bf16.xpose.msra.mxu0 0
        %531 = vmatprep.subr.bf16.mxu0 0
        %532 = vmatpush1.bf16.xpose.msra.mxu0 %v515
        %533 = vmatprep.subr.bf16.mxu0 0
        %534 = vmatpush2.bf16.xpose.msra.mxu0 0
        %535 = vmatprep.subr.bf16.mxu0 0
        %536 = vmatpush2.bf16.xpose.msra.mxu0 0
        %537 = vmatprep.subr.bf16.mxu0 0
        %538 = vmatpush2.bf16.xpose.msra.mxu0 0
        %539 = vmatprep.subr.bf16.mxu0 0
        %540 = vmatpush2.bf16.xpose.msra.mxu0 0
        %541 = vmatprep.subr.bf16.mxu0 0
        %542 = vmatpush2.bf16.xpose.msra.mxu0 0
        %543 = vmatprep.subr.bf16.mxu0 0
        %544 = vmatpush2.bf16.xpose.msra.mxu0 0
        %545 = vmatprep.subr.bf16.mxu0 0
        %546 = vmatpush2.bf16.xpose.msra.mxu0 0
        %547 = vmatprep.subr.bf16.mxu0 0
        %548 = vmatpush2.bf16.xpose.msra.mxu0 0
        %549 = vmatprep.mubr.bf16.mxu0 0
        %550 = vmatmul.mubr.bf16.gmra.mxu0 %v512
        %v551 = vpop.f32.mrf.mxu0
        %v552 = vadd.f32 0.0, %v551
        %v553 = vpop.f32.mrf.mxu0
        %v554 = vpop.f32.mrf.mxu0
        %v555 = vpop.f32.mrf.mxu0
        %556 = vdwg.mxu0
        %v557 = vsel %vm509, %v552, -inf
        %vm558 = vcmask 64512
        %v559 = vsel %vm558, %v557, -inf
        %560 = vmax.xlane.f32.xlu0 %v559
        %v561 = vpop.xlane.xlu0 %560
        %v562 = vsub.f32 %v557, %v561
        %v563 = vmul.f32 %v562, 1.442695
        %v564 = vpow.pop %v563
        %v565 = vsel %vm558, %v564, 0.0
        %566 = vadd.xlane.f32.xlu0 %v565
        %v567 = vpop.xlane.xlu0 %566
        %v568 = vrcp.pop %v567
        %v569 = vmul.f32 %v564, %v568
        %v570 = vpack.c.bf16 %v569, %v569
        %v572 = vsel %vm558, %v570, 0
        %vm574 = vcmask 1043456
        %v576 = vsel %vm574, %v504, 0
        %578 = vmatprep.subr.bf16.mxu0 0
        %579 = vmatpush1.bf16.msra.mxu0 0
        %580 = vmatprep.subr.bf16.mxu0 0
        %581 = vmatpush1.bf16.msra.mxu0 0
        %582 = vmatprep.subr.bf16.mxu0 0
        %583 = vmatpush1.bf16.msra.mxu0 0
        %584 = vmatprep.subr.bf16.mxu0 0
        %585 = vmatpush1.bf16.msra.mxu0 0
        %586 = vmatprep.subr.bf16.mxu0 0
        %587 = vmatpush1.bf16.msra.mxu0 0
        %588 = vmatprep.subr.bf16.mxu0 0
        %589 = vmatpush1.bf16.msra.mxu0 0
        %590 = vmatprep.subr.bf16.mxu0 0
        %591 = vmatpush1.bf16.msra.mxu0 0
        %592 = vmatprep.subr.bf16.mxu0 0
        %593 = vmatpush1.bf16.msra.mxu0 %v576
        %594 = vmatprep.subr.bf16.mxu0 0
        %595 = vmatpush2.bf16.msra.mxu0 0
        %596 = vmatprep.subr.bf16.mxu0 0
        %597 = vmatpush2.bf16.msra.mxu0 0
        %598 = vmatprep.subr.bf16.mxu0 0
        %599 = vmatpush2.bf16.msra.mxu0 0
        %600 = vmatprep.subr.bf16.mxu0 0
        %601 = vmatpush2.bf16.msra.mxu0 0
        %602 = vmatprep.subr.bf16.mxu0 0
        %603 = vmatpush2.bf16.msra.mxu0 0
        %604 = vmatprep.subr.bf16.mxu0 0
        %605 = vmatpush2.bf16.msra.mxu0 0
        %606 = vmatprep.subr.bf16.mxu0 0
        %607 = vmatpush2.bf16.msra.mxu0 0
        %608 = vmatprep.subr.bf16.mxu0 0
        %609 = vmatpush2.bf16.msra.mxu0 0
        %610 = vmatprep.mubr.bf16.mxu0 0
        %611 = vmatmul.mubr.bf16.gmra.mxu0 %v572
        %v612 = vpop.f32.mrf.mxu0
        %v613 = vadd.f32 0.0, %v612
        %v614 = vpop.f32.mrf.mxu0
        %v615 = vpop.f32.mrf.mxu0
        %v616 = vpop.f32.mrf.mxu0
        %617 = vdwg.mxu0
        %v618 = vpack.c.bf16 %v613, %v613
        %620 = vrot.lane.b32.xlu0 %v502, 96
        %v621 = vpop.permute.xlu0 %620
        %623 = vrot.lane.b32.xlu0 %v503, 96
        %v624 = vpop.permute.xlu0 %623
        %v626 = vsel %vm510, %v621, 0
        %v629 = vsel %vm510, %v624, 0
        %631 = vmatprep.subr.bf16.mxu0 0
        %632 = vmatpush1.bf16.xpose.msra.mxu0 0
        %633 = vmatprep.subr.bf16.mxu0 0
        %634 = vmatpush1.bf16.xpose.msra.mxu0 0
        %635 = vmatprep.subr.bf16.mxu0 0
        %636 = vmatpush1.bf16.xpose.msra.mxu0 0
        %637 = vmatprep.subr.bf16.mxu0 0
        %638 = vmatpush1.bf16.xpose.msra.mxu0 0
        %639 = vmatprep.subr.bf16.mxu0 0
        %640 = vmatpush1.bf16.xpose.msra.mxu0 0
        %641 = vmatprep.subr.bf16.mxu0 0
        %642 = vmatpush1.bf16.xpose.msra.mxu0 0
        %643 = vmatprep.subr.bf16.mxu0 0
        %644 = vmatpush1.bf16.xpose.msra.mxu0 0
        %645 = vmatprep.subr.bf16.mxu0 0
        %646 = vmatpush1.bf16.xpose.msra.mxu0 %v629
        %647 = vmatprep.subr.bf16.mxu0 0
        %648 = vmatpush2.bf16.xpose.msra.mxu0 0
        %649 = vmatprep.subr.bf16.mxu0 0
        %650 = vmatpush2.bf16.xpose.msra.mxu0 0
        %651 = vmatprep.subr.bf16.mxu0 0
        %652 = vmatpush2.bf16.xpose.msra.mxu0 0
        %653 = vmatprep.subr.bf16.mxu0 0
        %654 = vmatpush2.bf16.xpose.msra.mxu0 0
        %655 = vmatprep.subr.bf16.mxu0 0
        %656 = vmatpush2.bf16.xpose.msra.mxu0 0
        %657 = vmatprep.subr.bf16.mxu0 0
        %658 = vmatpush2.bf16.xpose.msra.mxu0 0
        %659 = vmatprep.subr.bf16.mxu0 0
        %660 = vmatpush2.bf16.xpose.msra.mxu0 0
        %661 = vmatprep.subr.bf16.mxu0 0
        %662 = vmatpush2.bf16.xpose.msra.mxu0 0
        %663 = vmatprep.mubr.bf16.mxu0 0
        %664 = vmatmul.mubr.bf16.gmra.mxu0 %v626
        %v665 = vpop.f32.mrf.mxu0
        %v666 = vadd.f32 0.0, %v665
        %v667 = vpop.f32.mrf.mxu0
        %v668 = vpop.f32.mrf.mxu0
        %v669 = vpop.f32.mrf.mxu0
        %670 = vdwg.mxu0
        %v671 = vsel %vm509, %v666, -inf
        %v672 = vsel %vm558, %v671, -inf
        %673 = vmax.xlane.f32.xlu0 %v672
        %v674 = vpop.xlane.xlu0 %673
        %v675 = vsub.f32 %v671, %v674
        %v676 = vmul.f32 %v675, 1.442695
        %v677 = vpow.pop %v676
        %v678 = vsel %vm558, %v677, 0.0
        %679 = vadd.xlane.f32.xlu0 %v678
        %v680 = vpop.xlane.xlu0 %679
        %v681 = vrcp.pop %v680
        %v682 = vmul.f32 %v677, %v681
        %v683 = vpack.c.bf16 %v682, %v682
        %685 = vrot.lane.b32.xlu0 %v504, 96
        %v686 = vpop.permute.xlu0 %685
        %v688 = vsel %vm558, %v683, 0
        %v691 = vsel %vm574, %v686, 0
        %693 = vmatprep.subr.bf16.mxu0 0
        %694 = vmatpush1.bf16.msra.mxu0 0
        %695 = vmatprep.subr.bf16.mxu0 0
        %696 = vmatpush1.bf16.msra.mxu0 0
        %697 = vmatprep.subr.bf16.mxu0 0
        %698 = vmatpush1.bf16.msra.mxu0 0
        %699 = vmatprep.subr.bf16.mxu0 0
        %700 = vmatpush1.bf16.msra.mxu0 0
        %701 = vmatprep.subr.bf16.mxu0 0
        %702 = vmatpush1.bf16.msra.mxu0 0
        %703 = vmatprep.subr.bf16.mxu0 0
        %704 = vmatpush1.bf16.msra.mxu0 0
        %705 = vmatprep.subr.bf16.mxu0 0
        %706 = vmatpush1.bf16.msra.mxu0 0
        %707 = vmatprep.subr.bf16.mxu0 0
        %708 = vmatpush1.bf16.msra.mxu0 %v691
        %709 = vmatprep.subr.bf16.mxu0 0
        %710 = vmatpush2.bf16.msra.mxu0 0
        %711 = vmatprep.subr.bf16.mxu0 0
        %712 = vmatpush2.bf16.msra.mxu0 0
        %713 = vmatprep.subr.bf16.mxu0 0
        %714 = vmatpush2.bf16.msra.mxu0 0
        %715 = vmatprep.subr.bf16.mxu0 0
        %716 = vmatpush2.bf16.msra.mxu0 0
        %717 = vmatprep.subr.bf16.mxu0 0
        %718 = vmatpush2.bf16.msra.mxu0 0
        %719 = vmatprep.subr.bf16.mxu0 0
        %720 = vmatpush2.bf16.msra.mxu0 0
        %721 = vmatprep.subr.bf16.mxu0 0
        %722 = vmatpush2.bf16.msra.mxu0 0
        %723 = vmatprep.subr.bf16.mxu0 0
        %724 = vmatpush2.bf16.msra.mxu0 0
        %725 = vmatprep.mubr.bf16.mxu0 0
        %726 = vmatmul.mubr.bf16.gmra.mxu0 %v688
        %v727 = vpop.f32.mrf.mxu0
        %v728 = vadd.f32 0.0, %v727
        %v729 = vpop.f32.mrf.mxu0
        %v730 = vpop.f32.mrf.mxu0
        %v731 = vpop.f32.mrf.mxu0
        %732 = vdwg.mxu0
        %v733 = vpack.c.bf16 %v728, %v728
        %v738 = vunpack.c.l.b16 %v280
        %v739 = vunpack.c.l.b16 %v281
        %v740 = vunpack.c.l.b16 %v282
        %v741 = vunpack.c.l.b16 %v283
        %v742 = vpack.c.b16 %v739, %v738
        %v743 = vpack.c.b16 %v741, %v740
        %v747 = vsel %vm510, %v733, 0
        %749 = vmatprep.subr.bf16.mxu0 0
        %750 = vmatpush1.bf16.msra.mxu0 0
        %751 = vmatprep.subr.bf16.mxu0 0
        %752 = vmatpush1.bf16.msra.mxu0 0
        %753 = vmatprep.subr.bf16.mxu0 0
        %754 = vmatpush1.bf16.msra.mxu0 0
        %755 = vmatprep.subr.bf16.mxu0 0
        %756 = vmatpush1.bf16.msra.mxu0 0
        %757 = vmatprep.subr.bf16.mxu0 0
        %758 = vmatpush1.bf16.msra.mxu0 0
        %759 = vmatprep.subr.bf16.mxu0 0
        %760 = vmatpush1.bf16.msra.mxu0 0
        %761 = vmatprep.subr.bf16.mxu0 0
        %762 = vmatpush1.bf16.msra.mxu0 %v743
        %763 = vmatprep.subr.bf16.mxu0 0
        %764 = vmatpush1.bf16.msra.mxu0 %v742
        %765 = vmatprep.subr.bf16.mxu0 0
        %766 = vmatpush2.bf16.msra.mxu0 0
        %767 = vmatprep.subr.bf16.mxu0 0
        %768 = vmatpush2.bf16.msra.mxu0 0
        %769 = vmatprep.subr.bf16.mxu0 0
        %770 = vmatpush2.bf16.msra.mxu0 0
        %771 = vmatprep.subr.bf16.mxu0 0
        %772 = vmatpush2.bf16.msra.mxu0 0
        %773 = vmatprep.subr.bf16.mxu0 0
        %774 = vmatpush2.bf16.msra.mxu0 0
        %775 = vmatprep.subr.bf16.mxu0 0
        %776 = vmatpush2.bf16.msra.mxu0 0
        %777 = vmatprep.subr.bf16.mxu0 0
        %778 = vmatpush2.bf16.msra.mxu0 0
        %779 = vmatprep.subr.bf16.mxu0 0
        %780 = vmatpush2.bf16.msra.mxu0 0
        %781 = vmatprep.mubr.bf16.mxu0 0
        %782 = vmatmul.mubr.bf16.gmra.mxu0 %v747
        %v783 = vpop.f32.mrf.mxu0
        %v784 = vadd.f32 0.0, %v783
        %v785 = vpop.f32.mrf.mxu0
        %v786 = vpop.f32.mrf.mxu0
        %v787 = vpop.f32.mrf.mxu0
        %788 = vdwg.mxu0
        %v793 = vunpack.c.l.b16 %v276
        %v794 = vunpack.c.l.b16 %v277
        %v795 = vunpack.c.l.b16 %v278
        %v796 = vunpack.c.l.b16 %v279
        %v797 = vpack.c.b16 %v794, %v793
        %v798 = vpack.c.b16 %v796, %v795
        %v802 = vsel %vm510, %v618, 0
        %804 = vmatprep.subr.bf16.mxu0 0
        %805 = vmatpush1.bf16.msra.mxu0 0
        %806 = vmatprep.subr.bf16.mxu0 0
        %807 = vmatpush1.bf16.msra.mxu0 0
        %808 = vmatprep.subr.bf16.mxu0 0
        %809 = vmatpush1.bf16.msra.mxu0 0
        %810 = vmatprep.subr.bf16.mxu0 0
        %811 = vmatpush1.bf16.msra.mxu0 0
        %812 = vmatprep.subr.bf16.mxu0 0
        %813 = vmatpush1.bf16.msra.mxu0 0
        %814 = vmatprep.subr.bf16.mxu0 0
        %815 = vmatpush1.bf16.msra.mxu0 0
        %816 = vmatprep.subr.bf16.mxu0 0
        %817 = vmatpush1.bf16.msra.mxu0 %v798
        %818 = vmatprep.subr.bf16.mxu0 0
        %819 = vmatpush1.bf16.msra.mxu0 %v797
        %820 = vmatprep.subr.bf16.mxu0 0
        %821 = vmatpush2.bf16.msra.mxu0 0
        %822 = vmatprep.subr.bf16.mxu0 0
        %823 = vmatpush2.bf16.msra.mxu0 0
        %824 = vmatprep.subr.bf16.mxu0 0
        %825 = vmatpush2.bf16.msra.mxu0 0
        %826 = vmatprep.subr.bf16.mxu0 0
        %827 = vmatpush2.bf16.msra.mxu0 0
        %828 = vmatprep.subr.bf16.mxu0 0
        %829 = vmatpush2.bf16.msra.mxu0 0
        %830 = vmatprep.subr.bf16.mxu0 0
        %831 = vmatpush2.bf16.msra.mxu0 0
        %832 = vmatprep.subr.bf16.mxu0 0
        %833 = vmatpush2.bf16.msra.mxu0 0
        %834 = vmatprep.subr.bf16.mxu0 0
        %835 = vmatpush2.bf16.msra.mxu0 0
        %836 = vmatprep.mubr.bf16.mxu0 0
        %837 = vmatmul.mubr.bf16.gmra.mxu0 %v802
        %v838 = vpop.f32.mrf.mxu0
        %v839 = vadd.f32 %v784, %v838
        %v840 = vpop.f32.mrf.mxu0
        %v841 = vpop.f32.mrf.mxu0
        %v842 = vpop.f32.mrf.mxu0
        %843 = vdwg.mxu0
        %844 = vrot.lane.b32.xlu0 %v502, 64
        %v845 = vpop.permute.xlu0 %844
        %846 = vrot.lane.b32.xlu0 %v503, 64
        %v847 = vpop.permute.xlu0 %846
        %v849 = vsel %vm510, %v845, 0
        %v852 = vsel %vm510, %v847, 0
        %854 = vmatprep.subr.bf16.mxu0 0
        %855 = vmatpush1.bf16.xpose.msra.mxu0 0
        %856 = vmatprep.subr.bf16.mxu0 0
        %857 = vmatpush1.bf16.xpose.msra.mxu0 0
        %858 = vmatprep.subr.bf16.mxu0 0
        %859 = vmatpush1.bf16.xpose.msra.mxu0 0
        %860 = vmatprep.subr.bf16.mxu0 0
        %861 = vmatpush1.bf16.xpose.msra.mxu0 0
        %862 = vmatprep.subr.bf16.mxu0 0
        %863 = vmatpush1.bf16.xpose.msra.mxu0 0
        %864 = vmatprep.subr.bf16.mxu0 0
        %865 = vmatpush1.bf16.xpose.msra.mxu0 0
        %866 = vmatprep.subr.bf16.mxu0 0
        %867 = vmatpush1.bf16.xpose.msra.mxu0 0
        %868 = vmatprep.subr.bf16.mxu0 0
        %869 = vmatpush1.bf16.xpose.msra.mxu0 %v852
        %870 = vmatprep.subr.bf16.mxu0 0
        %871 = vmatpush2.bf16.xpose.msra.mxu0 0
        %872 = vmatprep.subr.bf16.mxu0 0
        %873 = vmatpush2.bf16.xpose.msra.mxu0 0
        %874 = vmatprep.subr.bf16.mxu0 0
        %875 = vmatpush2.bf16.xpose.msra.mxu0 0
        %876 = vmatprep.subr.bf16.mxu0 0
        %877 = vmatpush2.bf16.xpose.msra.mxu0 0
        %878 = vmatprep.subr.bf16.mxu0 0
        %879 = vmatpush2.bf16.xpose.msra.mxu0 0
        %880 = vmatprep.subr.bf16.mxu0 0
        %881 = vmatpush2.bf16.xpose.msra.mxu0 0
        %882 = vmatprep.subr.bf16.mxu0 0
        %883 = vmatpush2.bf16.xpose.msra.mxu0 0
        %884 = vmatprep.subr.bf16.mxu0 0
        %885 = vmatpush2.bf16.xpose.msra.mxu0 0
        %886 = vmatprep.mubr.bf16.mxu0 0
        %887 = vmatmul.mubr.bf16.gmra.mxu0 %v849
        %v888 = vpop.f32.mrf.mxu0
        %v889 = vadd.f32 0.0, %v888
        %v890 = vpop.f32.mrf.mxu0
        %v891 = vpop.f32.mrf.mxu0
        %v892 = vpop.f32.mrf.mxu0
        %893 = vdwg.mxu0
        %v894 = vsel %vm509, %v889, -inf
        %v895 = vsel %vm558, %v894, -inf
        %896 = vmax.xlane.f32.xlu0 %v895
        %v897 = vpop.xlane.xlu0 %896
        %v898 = vsub.f32 %v894, %v897
        %v899 = vmul.f32 %v898, 1.442695
        %v900 = vpow.pop %v899
        %v901 = vsel %vm558, %v900, 0.0
        %902 = vadd.xlane.f32.xlu0 %v901
        %v903 = vpop.xlane.xlu0 %902
        %v904 = vrcp.pop %v903
        %v905 = vmul.f32 %v900, %v904
        %v906 = vpack.c.bf16 %v905, %v905
        %907 = vrot.lane.b32.xlu0 %v504, 64
        %v908 = vpop.permute.xlu0 %907
        %v910 = vsel %vm558, %v906, 0
        %v913 = vsel %vm574, %v908, 0
        %915 = vmatprep.subr.bf16.mxu0 0
        %916 = vmatpush1.bf16.msra.mxu0 0
        %917 = vmatprep.subr.bf16.mxu0 0
        %918 = vmatpush1.bf16.msra.mxu0 0
        %919 = vmatprep.subr.bf16.mxu0 0
        %920 = vmatpush1.bf16.msra.mxu0 0
        %921 = vmatprep.subr.bf16.mxu0 0
        %922 = vmatpush1.bf16.msra.mxu0 0
        %923 = vmatprep.subr.bf16.mxu0 0
        %924 = vmatpush1.bf16.msra.mxu0 0
        %925 = vmatprep.subr.bf16.mxu0 0
        %926 = vmatpush1.bf16.msra.mxu0 0
        %927 = vmatprep.subr.bf16.mxu0 0
        %928 = vmatpush1.bf16.msra.mxu0 0
        %929 = vmatprep.subr.bf16.mxu0 0
        %930 = vmatpush1.bf16.msra.mxu0 %v913
        %931 = vmatprep.subr.bf16.mxu0 0
        %932 = vmatpush2.bf16.msra.mxu0 0
        %933 = vmatprep.subr.bf16.mxu0 0
        %934 = vmatpush2.bf16.msra.mxu0 0
        %935 = vmatprep.subr.bf16.mxu0 0
        %936 = vmatpush2.bf16.msra.mxu0 0
        %937 = vmatprep.subr.bf16.mxu0 0
        %938 = vmatpush2.bf16.msra.mxu0 0
        %939 = vmatprep.subr.bf16.mxu0 0
        %940 = vmatpush2.bf16.msra.mxu0 0
        %941 = vmatprep.subr.bf16.mxu0 0
        %942 = vmatpush2.bf16.msra.mxu0 0
        %943 = vmatprep.subr.bf16.mxu0 0
        %944 = vmatpush2.bf16.msra.mxu0 0
        %945 = vmatprep.subr.bf16.mxu0 0
        %946 = vmatpush2.bf16.msra.mxu0 0
        %947 = vmatprep.mubr.bf16.mxu0 0
        %948 = vmatmul.mubr.bf16.gmra.mxu0 %v910
        %v949 = vpop.f32.mrf.mxu0
        %v950 = vadd.f32 0.0, %v949
        %v951 = vpop.f32.mrf.mxu0
        %v952 = vpop.f32.mrf.mxu0
        %v953 = vpop.f32.mrf.mxu0
        %954 = vdwg.mxu0
        %v955 = vpack.c.bf16 %v950, %v950
        %v960 = vunpack.c.l.b16 %v284
        %v961 = vunpack.c.l.b16 %v285
        %v962 = vunpack.c.l.b16 %v286
        %v963 = vunpack.c.l.b16 %v287
        %v964 = vpack.c.b16 %v961, %v960
        %v965 = vpack.c.b16 %v963, %v962
        %v969 = vsel %vm510, %v955, 0
        %971 = vmatprep.subr.bf16.mxu0 0
        %972 = vmatpush1.bf16.msra.mxu0 0
        %973 = vmatprep.subr.bf16.mxu0 0
        %974 = vmatpush1.bf16.msra.mxu0 0
        %975 = vmatprep.subr.bf16.mxu0 0
        %976 = vmatpush1.bf16.msra.mxu0 0
        %977 = vmatprep.subr.bf16.mxu0 0
        %978 = vmatpush1.bf16.msra.mxu0 0
        %979 = vmatprep.subr.bf16.mxu0 0
        %980 = vmatpush1.bf16.msra.mxu0 0
        %981 = vmatprep.subr.bf16.mxu0 0
        %982 = vmatpush1.bf16.msra.mxu0 0
        %983 = vmatprep.subr.bf16.mxu0 0
        %984 = vmatpush1.bf16.msra.mxu0 %v965
        %985 = vmatprep.subr.bf16.mxu0 0
        %986 = vmatpush1.bf16.msra.mxu0 %v964
        %987 = vmatprep.subr.bf16.mxu0 0
        %988 = vmatpush2.bf16.msra.mxu0 0
        %989 = vmatprep.subr.bf16.mxu0 0
        %990 = vmatpush2.bf16.msra.mxu0 0
        %991 = vmatprep.subr.bf16.mxu0 0
        %992 = vmatpush2.bf16.msra.mxu0 0
        %993 = vmatprep.subr.bf16.mxu0 0
        %994 = vmatpush2.bf16.msra.mxu0 0
        %995 = vmatprep.subr.bf16.mxu0 0
        %996 = vmatpush2.bf16.msra.mxu0 0
        %997 = vmatprep.subr.bf16.mxu0 0
        %998 = vmatpush2.bf16.msra.mxu0 0
        %999 = vmatprep.subr.bf16.mxu0 0
        %1000 = vmatpush2.bf16.msra.mxu0 0
        %1001 = vmatprep.subr.bf16.mxu0 0
        %1002 = vmatpush2.bf16.msra.mxu0 0
        %1003 = vmatprep.mubr.bf16.mxu0 0
        %1004 = vmatmul.mubr.bf16.gmra.mxu0 %v969
        %v1005 = vpop.f32.mrf.mxu0
        %v1006 = vadd.f32 0.0, %v1005
        %v1007 = vpop.f32.mrf.mxu0
        %v1008 = vpop.f32.mrf.mxu0
        %v1009 = vpop.f32.mrf.mxu0
        %1010 = vdwg.mxu0
        %v1011 = vadd.f32 %v839, %v1006
        %1012 = vrot.lane.b32.xlu0 %v502, 32
        %v1013 = vpop.permute.xlu0 %1012
        %1014 = vrot.lane.b32.xlu0 %v503, 32
        %v1015 = vpop.permute.xlu0 %1014
        %v1017 = vsel %vm510, %v1013, 0
        %v1020 = vsel %vm510, %v1015, 0
        %1022 = vmatprep.subr.bf16.mxu0 0
        %1023 = vmatpush1.bf16.xpose.msra.mxu0 0
        %1024 = vmatprep.subr.bf16.mxu0 0
        %1025 = vmatpush1.bf16.xpose.msra.mxu0 0
        %1026 = vmatprep.subr.bf16.mxu0 0
        %1027 = vmatpush1.bf16.xpose.msra.mxu0 0
        %1028 = vmatprep.subr.bf16.mxu0 0
        %1029 = vmatpush1.bf16.xpose.msra.mxu0 0
        %1030 = vmatprep.subr.bf16.mxu0 0
        %1031 = vmatpush1.bf16.xpose.msra.mxu0 0
        %1032 = vmatprep.subr.bf16.mxu0 0
        %1033 = vmatpush1.bf16.xpose.msra.mxu0 0
        %1034 = vmatprep.subr.bf16.mxu0 0
        %1035 = vmatpush1.bf16.xpose.msra.mxu0 0
        %1036 = vmatprep.subr.bf16.mxu0 0
        %1037 = vmatpush1.bf16.xpose.msra.mxu0 %v1020
        %1038 = vmatprep.subr.bf16.mxu0 0
        %1039 = vmatpush2.bf16.xpose.msra.mxu0 0
        %1040 = vmatprep.subr.bf16.mxu0 0
        %1041 = vmatpush2.bf16.xpose.msra.mxu0 0
        %1042 = vmatprep.subr.bf16.mxu0 0
        %1043 = vmatpush2.bf16.xpose.msra.mxu0 0
        %1044 = vmatprep.subr.bf16.mxu0 0
        %1045 = vmatpush2.bf16.xpose.msra.mxu0 0
        %1046 = vmatprep.subr.bf16.mxu0 0
        %1047 = vmatpush2.bf16.xpose.msra.mxu0 0
        %1048 = vmatprep.subr.bf16.mxu0 0
        %1049 = vmatpush2.bf16.xpose.msra.mxu0 0
        %1050 = vmatprep.subr.bf16.mxu0 0
        %1051 = vmatpush2.bf16.xpose.msra.mxu0 0
        %1052 = vmatprep.subr.bf16.mxu0 0
        %1053 = vmatpush2.bf16.xpose.msra.mxu0 0
        %1054 = vmatprep.mubr.bf16.mxu0 0
        %1055 = vmatmul.mubr.bf16.gmra.mxu0 %v1017
        %v1056 = vpop.f32.mrf.mxu0
        %v1057 = vadd.f32 0.0, %v1056
        %v1058 = vpop.f32.mrf.mxu0
        %v1059 = vpop.f32.mrf.mxu0
        %v1060 = vpop.f32.mrf.mxu0
        %1061 = vdwg.mxu0
        %v1062 = vsel %vm509, %v1057, -inf
        %v1063 = vsel %vm558, %v1062, -inf
        %1064 = vmax.xlane.f32.xlu0 %v1063
        %v1065 = vpop.xlane.xlu0 %1064
        %v1066 = vsub.f32 %v1062, %v1065
        %v1067 = vmul.f32 %v1066, 1.442695
        %v1068 = vpow.pop %v1067
        %v1069 = vsel %vm558, %v1068, 0.0
        %1070 = vadd.xlane.f32.xlu0 %v1069
        %v1071 = vpop.xlane.xlu0 %1070
        %v1072 = vrcp.pop %v1071
        %v1073 = vmul.f32 %v1068, %v1072
        %v1074 = vpack.c.bf16 %v1073, %v1073
        %1075 = vrot.lane.b32.xlu0 %v504, 32
        %v1076 = vpop.permute.xlu0 %1075
        %v1078 = vsel %vm558, %v1074, 0
        %v1081 = vsel %vm574, %v1076, 0
        %1083 = vmatprep.subr.bf16.mxu0 0
        %1084 = vmatpush1.bf16.msra.mxu0 0
        %1085 = vmatprep.subr.bf16.mxu0 0
        %1086 = vmatpush1.bf16.msra.mxu0 0
        %1087 = vmatprep.subr.bf16.mxu0 0
        %1088 = vmatpush1.bf16.msra.mxu0 0
        %1089 = vmatprep.subr.bf16.mxu0 0
        %1090 = vmatpush1.bf16.msra.mxu0 0
        %1091 = vmatprep.subr.bf16.mxu0 0
        %1092 = vmatpush1.bf16.msra.mxu0 0
        %1093 = vmatprep.subr.bf16.mxu0 0
        %1094 = vmatpush1.bf16.msra.mxu0 0
        %1095 = vmatprep.subr.bf16.mxu0 0
        %1096 = vmatpush1.bf16.msra.mxu0 0
        %1097 = vmatprep.subr.bf16.mxu0 0
        %1098 = vmatpush1.bf16.msra.mxu0 %v1081
        %1099 = vmatprep.subr.bf16.mxu0 0
        %1100 = vmatpush2.bf16.msra.mxu0 0
        %1101 = vmatprep.subr.bf16.mxu0 0
        %1102 = vmatpush2.bf16.msra.mxu0 0
        %1103 = vmatprep.subr.bf16.mxu0 0
        %1104 = vmatpush2.bf16.msra.mxu0 0
        %1105 = vmatprep.subr.bf16.mxu0 0
        %1106 = vmatpush2.bf16.msra.mxu0 0
        %1107 = vmatprep.subr.bf16.mxu0 0
        %1108 = vmatpush2.bf16.msra.mxu0 0
        %1109 = vmatprep.subr.bf16.mxu0 0
        %1110 = vmatpush2.bf16.msra.mxu0 0
        %1111 = vmatprep.subr.bf16.mxu0 0
        %1112 = vmatpush2.bf16.msra.mxu0 0
        %1113 = vmatprep.subr.bf16.mxu0 0
        %1114 = vmatpush2.bf16.msra.mxu0 0
        %1115 = vmatprep.mubr.bf16.mxu0 0
        %1116 = vmatmul.mubr.bf16.gmra.mxu0 %v1078
        %v1117 = vpop.f32.mrf.mxu0
        %v1118 = vadd.f32 0.0, %v1117
        %v1119 = vpop.f32.mrf.mxu0
        %v1120 = vpop.f32.mrf.mxu0
        %v1121 = vpop.f32.mrf.mxu0
        %1122 = vdwg.mxu0
        %v1123 = vpack.c.bf16 %v1118, %v1118
        %v1128 = vunpack.c.l.b16 %v288
        %v1129 = vunpack.c.l.b16 %v289
        %v1130 = vunpack.c.l.b16 %v290
        %v1131 = vunpack.c.l.b16 %v291
        %v1132 = vpack.c.b16 %v1129, %v1128
        %v1133 = vpack.c.b16 %v1131, %v1130
        %v1137 = vsel %vm510, %v1123, 0
        %1139 = vmatprep.subr.bf16.mxu0 0
        %1140 = vmatpush1.bf16.msra.mxu0 0
        %1141 = vmatprep.subr.bf16.mxu0 0
        %1142 = vmatpush1.bf16.msra.mxu0 0
        %1143 = vmatprep.subr.bf16.mxu0 0
        %1144 = vmatpush1.bf16.msra.mxu0 0
        %1145 = vmatprep.subr.bf16.mxu0 0
        %1146 = vmatpush1.bf16.msra.mxu0 0
        %1147 = vmatprep.subr.bf16.mxu0 0
        %1148 = vmatpush1.bf16.msra.mxu0 0
        %1149 = vmatprep.subr.bf16.mxu0 0
        %1150 = vmatpush1.bf16.msra.mxu0 0
        %1151 = vmatprep.subr.bf16.mxu0 0
        %1152 = vmatpush1.bf16.msra.mxu0 %v1133
        %1153 = vmatprep.subr.bf16.mxu0 0
        %1154 = vmatpush1.bf16.msra.mxu0 %v1132
        %1155 = vmatprep.subr.bf16.mxu0 0
        %1156 = vmatpush2.bf16.msra.mxu0 0
        %1157 = vmatprep.subr.bf16.mxu0 0
        %1158 = vmatpush2.bf16.msra.mxu0 0
        %1159 = vmatprep.subr.bf16.mxu0 0
        %1160 = vmatpush2.bf16.msra.mxu0 0
        %1161 = vmatprep.subr.bf16.mxu0 0
        %1162 = vmatpush2.bf16.msra.mxu0 0
        %1163 = vmatprep.subr.bf16.mxu0 0
        %1164 = vmatpush2.bf16.msra.mxu0 0
        %1165 = vmatprep.subr.bf16.mxu0 0
        %1166 = vmatpush2.bf16.msra.mxu0 0
        %1167 = vmatprep.subr.bf16.mxu0 0
        %1168 = vmatpush2.bf16.msra.mxu0 0
        %1169 = vmatprep.subr.bf16.mxu0 0
        %1170 = vmatpush2.bf16.msra.mxu0 0
        %1171 = vmatprep.mubr.bf16.mxu0 0
        %1172 = vmatmul.mubr.bf16.gmra.mxu0 %v1137
        %v1173 = vpop.f32.mrf.mxu0
        %v1174 = vadd.f32 0.0, %v1173
        %v1175 = vpop.f32.mrf.mxu0
        %v1176 = vpop.f32.mrf.mxu0
        %v1177 = vpop.f32.mrf.mxu0
        %1178 = vdwg.mxu0
        %v1179 = vadd.f32 %v1011, %v1174
        %v1181 = vlaneseq
        %v1182 = vshrl.u32 %v1181, 7
        %v1183 = vsub.s32 0, %v1182
        %v1184 = vrot.slane %v292, %v1183
        %v1186 = vadd.f32 %v1179, %v1184
        %1187 = vst [vmem:[%s241] sm:$0xff] %v1186
        %s1188 = sand.u32 %s119, 1
        %s1189 = scalar_lea.sflag [#allocation4], %s1188
        %s1190 = sand.u32 %s119, 1
        %s1191 = smul.addr %s1190, 8
        %s1192 = scalar_lea.vmem [#allocation8], %s1191
        // Predicated region
        $region49: #{tpu_custom_call.1} parent=35 // pred_check
          %p1193 = pneg %p129
        $region50: #{tpu_custom_call.1} parent=35 // pred_check_branch
          %1195 = sbr.rel (%p1193) target = $region52
        $region51: #{tpu_custom_call.1} parent=35 // pred_region
          %s1197 = ssub.s32 128, 128
          %1198 = vsyncadd %s1189, %s1197
          %s1199 = smul.addr %s22, 128
          %s1200 = scalar_lea.hbm %s4, %s1199
          %s1202 = sshll.u32 %s1192, 4
          %s1203 = int_to_ptr.vmem [resolvable:$true] %s1202
          %1205 = dma.vmem_to_hbm [thread:$0]  %s1203, 128, %s1200, %s1189
        $region52: #{tpu_custom_call.1} parent=35 // pred_fallthru
          _
      $region36: #{tpu_custom_call.1} parent=5 // pred_fallthru
        _
      %p1206 = scmp.le.s32.totalorder 2, %s17
      // Predicated region
      $region53: #{tpu_custom_call.1} parent=5 // pred_check
        %p1207 = pneg %p1206
      $region54: #{tpu_custom_call.1} parent=5 // pred_check_branch
        %1209 = sbr.rel (%p1207) target = $region56
      $region55: #{tpu_custom_call.1} parent=5 // pred_region
        %s1210 = ssub.s32 %s17, 2
        // Predicated region
        $region57: #{tpu_custom_call.1} parent=55 // pred_check
          %p1211 = pneg %p135
        $region58: #{tpu_custom_call.1} parent=55 // pred_check_branch
          %1213 = sbr.rel (%p1211) target = $region60
        $region59: #{tpu_custom_call.1} parent=55 // pred_region
          %s1214 = sand.u32 %s120, 1
          %s1215 = scalar_lea.sflag [#allocation4], %s1214
          %s1216 = sand.u32 %s120, 1
          %s1217 = smul.addr %s1216, 8
          %s1218 = scalar_lea.vmem [#allocation8], %s1217
          %1219 = dma.done %s1215, 128
        $region60: #{tpu_custom_call.1} parent=55 // pred_fallthru
          _
      $region56: #{tpu_custom_call.1} parent=5 // pred_fallthru
        _
    $region6: #{tpu_custom_call.1} parent=1 // loop_footer
      %s21 = sadd.s32 1, %s17
    $region7: #{tpu_custom_call.1} parent=1 // loop_footer_branch
      %16 = sbr.rel target = $region3
    $region8: #{tpu_custom_call.1} parent=1 // loop_exit
      _
    %1220 = vsyncpa [#allocation3], 1
    %s1221 = scalar_lea.sflag [#allocation3], 1
    %1222 = vsyncpa %s1221, 1
    %1223 = vsyncpa [#allocation6], 1
    %1224 = vsyncpa [#allocation4], 1
    %s1225 = scalar_lea.sflag [#allocation4], 1
    %1226 = vsyncpa %s1225, 1

</llo_original>
